<compile_context>
chip_gen: v7x
topology: tpu7x:2x2x1
jax: 0.10.0
libtpu: 0.0.40
codegen_flags: <defaults>
</compile_context>

<pallas_src>
import math

import jax
import jax.numpy as jnp
from jax.experimental import pallas as pl
from jax.experimental.pallas import tpu as pltpu


# ---------------------------------------------------------------------------
# Generation-aware VMEM budgeting.
# ---------------------------------------------------------------------------
def _select_vmem_budget():
    """Return (total_live_tile_budget_bytes, vmem_limit_bytes_or_None)."""
    kind = ""
    try:
        kind = jax.devices()[0].device_kind.lower()
    except Exception:  # pragma: no cover - defensive
        pass
    mib = 1024 * 1024
    if "v7" in kind:
        # 64 MiB physical VMEM: keep total live tiles ~24 MiB, scoped limit 40 MiB.
        return 24 * mib, 40 * mib
    if ("v6" in kind) or ("v5" in kind) or ("v4" in kind):
        # 128 MiB physical VMEM: ~32 MiB live tiles, raise the scoped limit to 64 MiB
        # (v5e's default scoped limit is only 16 MiB, so the explicit raise matters).
        return 32 * mib, 64 * mib
    # Unknown backend (interpret mode, future chips): stay under any default.
    return 12 * mib, None


_LIVE_BUDGET, _VMEM_LIMIT = _select_vmem_budget()
_TINY_BYTES = 512 * 1024          # below this, use a gridless single-block call
_LANE_CAP = 32768                 # max lanes for the reshaped last dim (128 KiB/row f32)


def _compiler_params(dim_sem):
    kwargs = dict(dimension_semantics=dim_sem)
    if _VMEM_LIMIT is not None:
        kwargs["vmem_limit_bytes"] = _VMEM_LIMIT
    return pltpu.CompilerParams(**kwargs)


def _cost_estimate(B, S, D, itemsize):
    # x read + out write + pe read; one add per output element.
    return pl.CostEstimate(
        flops=B * S * D,
        transcendentals=0,
        bytes_accessed=(2 * B * S * D + S * D) * itemsize,
    )


# ---------------------------------------------------------------------------
# Sinusoidal table (identical math to the PyTorch __init__, odd-D safe).
# ---------------------------------------------------------------------------
def _build_encoding(d_model: int, max_len: int = 5000) -> jnp.ndarray:
    position = jnp.arange(0, max_len, dtype=jnp.float32)[:, None]            # (L, 1)
    div_term = jnp.exp(
        jnp.arange(0, d_model, 2, dtype=jnp.float32) * (-math.log(10000.0) / d_model)
    )                                                                         # (ceil(D/2),)
    enc = jnp.zeros((max_len, d_model), dtype=jnp.float32)
    enc = enc.at[:, 0::2].set(jnp.sin(position * div_term))
    enc = enc.at[:, 1::2].set(jnp.cos(position * div_term[: d_model // 2]))
    return enc                                                                # (L, D)


# ---------------------------------------------------------------------------
# Kernel body (shared by every path): streaming elementwise add.
#   - tiled paths: both refs are (rows, lanes)            -> exact-shape add
#   - tiny path:   x is (B, S, D), pe is (S, D)           -> leading-dim broadcast
# ---------------------------------------------------------------------------
def _add_kernel(x_ref, pe_ref, o_ref):
    o_ref[...] = x_ref[...] + pe_ref[...]


# ---------------------------------------------------------------------------
# Path 1: gridless single-block call for tiny problems.
# ---------------------------------------------------------------------------
def _forward_single_block(x, pe, donate_x):
    B, S, D = x.shape
    return pl.pallas_call(
        _add_kernel,
        out_shape=jax.ShapeDtypeStruct((B, S, D), x.dtype),
        cost_estimate=_cost_estimate(B, S, D, x.dtype.itemsize),
        input_output_aliases={0: 0} if donate_x else {},
    )(x, pe)


# ---------------------------------------------------------------------------
# Path 2: lane-dense reshaped path (requires S*D % 128 == 0).
# ---------------------------------------------------------------------------
def _pick_lane_width(M: int) -> int:
    """Largest multiple of 128 that divides M and is <= _LANE_CAP."""
    q = M // 128
    best = 1
    d = 1
    while d * d <= q:
        if q % d == 0:
            for c in (d, q // d):
                if c > best and 128 * c <= _LANE_CAP:
                    best = c
        d += 1
    return 128 * best


def _forward_lane_dense(x, pe, donate_x):
    B, S, D = x.shape
    isz = x.dtype.itemsize
    M = S * D
    L = _pick_lane_width(M)                     # wide lane dim (multiple of 128)
    R = M // L                                  # row (sublane-tiled) dim
    sub = 8 * max(1, 4 // isz)                  # sublane multiple: 8 f32, 16 bf16

    x3 = x.reshape(B, R, L)                     # layout plumbing only (row-major safe)
    pe2 = pe.reshape(R, L)

    # Live VMEM per step ~ double-buffered x + out + pe row tiles.
    tr = max(1, _LIVE_BUDGET // (6 * L * isz))
    tr = max(sub, (tr // sub) * sub)
    if tr >= R:
        tr = R                                  # full-extent block: always legal
    n_r = pl.cdiv(R, tr)

    # v7x megacore: avoid a single parallel block when B == 1 and we can split rows.
    if B == 1 and n_r == 1 and R >= 2 * sub:
        tr = max(sub, ((R // 2) // sub) * sub)
        n_r = pl.cdiv(R, tr)

    grid = (n_r, B)                             # B innermost -> pe tile stays resident
    out = pl.pallas_call(
        _add_kernel,
        out_shape=jax.ShapeDtypeStruct((B, R, L), x.dtype),
        grid_spec=pl.GridSpec(
            grid=grid,
            in_specs=[
                pl.BlockSpec((pl.Squeezed(), tr, L), lambda r, b: (b, r, 0)),
                pl.BlockSpec((tr, L), lambda r, b: (r, 0)),
            ],
            out_specs=pl.BlockSpec((pl.Squeezed(), tr, L), lambda r, b: (b, r, 0)),
        ),
        compiler_params=_compiler_params(("parallel", "parallel")),
        cost_estimate=_cost_estimate(B, S, D, isz),
        input_output_aliases={0: 0} if donate_x else {},
    )(x3, pe2)
    return out.reshape(B, S, D)


# ---------------------------------------------------------------------------
# Path 3: fallback when S*D % 128 != 0 (correct, but stores may be masked).
# ---------------------------------------------------------------------------
def _forward_seq_tiled(x, pe, donate_x):
    B, S, D = x.shape
    isz = x.dtype.itemsize
    sub = 8 * max(1, 4 // isz)

    ts = max(1, _LIVE_BUDGET // (6 * D * isz))
    ts = max(sub, (ts // sub) * sub)
    if ts >= S:
        ts = S
    n_s = pl.cdiv(S, ts)
    if B == 1 and n_s == 1 and S >= 2 * sub:
        ts = max(sub, ((S // 2) // sub) * sub)
        n_s = pl.cdiv(S, ts)

    grid = (n_s, B)                             # B innermost -> pe tile resident over B
    return pl.pallas_call(
        _add_kernel,
        out_shape=jax.ShapeDtypeStruct((B, S, D), x.dtype),
        grid_spec=pl.GridSpec(
            grid=grid,
            in_specs=[
                pl.BlockSpec((pl.Squeezed(), ts, D), lambda s, b: (b, s, 0)),
                pl.BlockSpec((ts, D), lambda s, b: (s, 0)),
            ],
            out_specs=pl.BlockSpec((pl.Squeezed(), ts, D), lambda s, b: (b, s, 0)),
        ),
        compiler_params=_compiler_params(("parallel", "parallel")),
        cost_estimate=_cost_estimate(B, S, D, isz),
        input_output_aliases={0: 0} if donate_x else {},
    )(x, pe)


# ---------------------------------------------------------------------------
# Public entry point: x (B, S, D) + encoding[:S, :]  (== PyTorch forward).
# ---------------------------------------------------------------------------
def positional_encoding_forward(x: jnp.ndarray, encoding: jnp.ndarray,
                                *, donate_x: bool = False) -> jnp.ndarray:
    B, S, D = x.shape
    # Glue: static slice + dtype match.  (PyTorch would promote bf16+f32 -> f32;
    # here the output keeps x.dtype — documented deviation.)
    pe = encoding[:S, :].astype(x.dtype)
    isz = x.dtype.itemsize
    total_bytes = (2 * B * S * D + S * D) * isz

    if total_bytes <= _TINY_BYTES:
        return _forward_single_block(x, pe, donate_x)
    if (S * D) % 128 == 0:
        return _forward_lane_dense(x, pe, donate_x)
    return _forward_seq_tiled(x, pe, donate_x)


if __name__ == "__main__":
    MAX_LEN = 5000

    # Case 1: module demo shape (B=2, S=8, D=32) -> tiny single-block path.
    B, S, D = 2, 8, 32
    x = jax.random.normal(jax.random.PRNGKey(0), (B, S, D), dtype=jnp.float32)
    enc = _build_encoding(D, MAX_LEN)
    out = jax.block_until_ready(positional_encoding_forward(x, enc))
    ref = x + enc[None, :S, :]
    assert out.shape == (B, S, D)
    assert jnp.allclose(out, ref, atol=1e-6), "mismatch vs reference (tiny path)"

    # Case 2: lane-dense reshaped tiled path (S*D % 128 == 0, above tiny cutoff).
    B2, S2, D2 = 2, 512, 256
    x2 = jax.random.normal(jax.random.PRNGKey(1), (B2, S2, D2), dtype=jnp.float32)
    enc2 = _build_encoding(D2, MAX_LEN)
    out2 = jax.block_until_ready(positional_encoding_forward(x2, enc2))
    ref2 = x2 + enc2[None, :S2, :]
    assert out2.shape == (B2, S2, D2)
    assert jnp.allclose(out2, ref2, atol=1e-6), "mismatch vs reference (lane-dense path)"

    # Case 3: fallback path (S*D % 128 != 0), above tiny cutoff.
    B3, S3, D3 = 4, 500, 40
    x3 = jax.random.normal(jax.random.PRNGKey(2), (B3, S3, D3), dtype=jnp.float32)
    enc3 = _build_encoding(D3, MAX_LEN)
    out3 = jax.block_until_ready(positional_encoding_forward(x3, enc3))
    ref3 = x3 + enc3[None, :S3, :]
    assert out3.shape == (B3, S3, D3)
    assert jnp.allclose(out3, ref3, atol=1e-6), "mismatch vs reference (fallback path)"

    print("KERNEL_OK")
</pallas_src>

<mosaic_0001>
module attributes {stable_mosaic.version = 11 : i64} {
  func.func @_add_kernel(%arg0: memref<2x8x32xf32, #tpu.memory_space<vmem>>, %arg1: memref<8x32xf32, #tpu.memory_space<vmem>>, %arg2: memref<2x8x32xf32, #tpu.memory_space<vmem>>) attributes {dimension_semantics = [], scalar_prefetch = 0 : i64, scratch_operands = 0 : i64, tpu.core_type = #tpu.core_type<tc>} {
    %c0 = arith.constant 0 : index
    %c0_0 = arith.constant 0 : index
    %c0_1 = arith.constant 0 : index
    %0 = vector.load %arg0[%c0, %c0_0, %c0_1] : memref<2x8x32xf32, #tpu.memory_space<vmem>>, vector<2x8x32xf32>
    %c0_2 = arith.constant 0 : index
    %c0_3 = arith.constant 0 : index
    %1 = vector.load %arg1[%c0_2, %c0_3] : memref<8x32xf32, #tpu.memory_space<vmem>>, vector<8x32xf32>
    %2 = vector.shape_cast %1 : vector<8x32xf32> to vector<1x8x32xf32>
    %3 = vector.broadcast %2 : vector<1x8x32xf32> to vector<2x8x32xf32>
    %4 = arith.addf %0, %3 : vector<2x8x32xf32>
    %c0_4 = arith.constant 0 : index
    %c0_5 = arith.constant 0 : index
    %c0_6 = arith.constant 0 : index
    %5 = vector.load %arg2[%c0_4, %c0_5, %c0_6] : memref<2x8x32xf32, #tpu.memory_space<vmem>>, vector<2x8x32xf32>
    tpu.vector_store %arg2[%c0_4, %c0_5, %c0_6], %4 {strides = array<i32>} : memref<2x8x32xf32, #tpu.memory_space<vmem>>, vector<2x8x32xf32>,
    return
  }
}

</mosaic_0001>

<llo_original>
// kernel: tpu_custom_call.1
$region0: #{tpu_custom_call.1}
  #allocation0 [shape = 'u32[]', space=smem, size = 0x4, offset = 0x4, fixed_abs, tag = 'smem constant byte address 0x4 - core index']
  #allocation1 [shape = 'u32[144,128]{1,0:T(1,128)}', space=vmem, size = 0x12000, scoped, tag = 'internal scratch']
  %s0 = inlined_call_operand.hbm [shape: f32[2,8,32], index: 0, kind: input, shape index: {}]
  %s1 = inlined_call_operand.hbm [shape: f32[8,32], index: 1, kind: input, shape index: {}]
  %s2 = inlined_call_operand.hbm [shape: f32[2,8,32], index: 2, kind: output, shape index: {}]
  %s3 = sld [smem:[#allocation0]]
  $region26: #{tpu_custom_call.1} parent=0
    _
  %s5 = ssub.s32 1, %s3
  %s6 = scalar_select 0, %s5, %s3
  $region1: #{tpu_custom_call.1} parent=0
    #allocation2 [shape = 'u8[8192]{0}', space=vmem, size = 0x2000, scoped, tag = 'input window, operand 0, single buffered']
    #allocation3 [shape = 's32[1]{0}', space=sflag, size = 0x4, scoped, tag = 'scoped memory for tpu_custom_call.1']
    #allocation4 [shape = 's32[1]{0}', space=sflag, size = 0x4, scoped, tag = 'scoped memory for tpu_custom_call.1']
    #allocation5 [shape = 'u8[4096]{0}', space=vmem, size = 0x1000, scoped, tag = 'input window, operand 1, single buffered']
    #allocation6 [shape = 's32[1]{0}', space=sflag, size = 0x4, scoped, tag = 'scoped memory for tpu_custom_call.1']
    #allocation7 [shape = 'u8[8192]{0}', space=vmem, size = 0x2000, scoped, tag = 'output window, operand 0, single buffered']
    %7 = vsyncpa [#allocation3], 0
    %8 = vsyncpa [#allocation6], 0
    %9 = vsyncpa [#allocation4], 0
    // Predicated region
    $region2: #{tpu_custom_call.1} parent=1 // pred_check
      _
    $region3: #{tpu_custom_call.1} parent=1 // pred_check_branch
      %11 = sbr.rel (0) target = $region5
    $region4: #{tpu_custom_call.1} parent=1 // pred_region
      %s13 = ssub.s32 256, 256
      %14 = vsyncadd [#allocation3], %s13
      %s15 = sshll.u32 [#allocation2], 4
      %s16 = int_to_ptr.vmem [resolvable:$true] %s15
      %21 = dma.hbm_to_vmem [thread:$0]  %s0, 256, %s16, [#allocation3], 128, 128, 8
    $region5: #{tpu_custom_call.1} parent=1 // pred_fallthru
      _
    // Predicated region
    $region6: #{tpu_custom_call.1} parent=1 // pred_check
      _
    $region7: #{tpu_custom_call.1} parent=1 // pred_check_branch
      %23 = sbr.rel (0) target = $region9
    $region8: #{tpu_custom_call.1} parent=1 // pred_region
      %s25 = ssub.s32 128, 128
      %26 = vsyncadd [#allocation6], %s25
      %s28 = sshll.u32 [#allocation5], 4
      %s29 = int_to_ptr.vmem [resolvable:$true] %s28
      %31 = dma.hbm_to_vmem [thread:$0]  %s1, 128, %s29, [#allocation6]
    $region9: #{tpu_custom_call.1} parent=1 // pred_fallthru
      _
    // Predicated region
    $region10: #{tpu_custom_call.1} parent=1 // pred_check
      _
    $region11: #{tpu_custom_call.1} parent=1 // pred_check_branch
      %33 = sbr.rel (0) target = $region13
    $region12: #{tpu_custom_call.1} parent=1 // pred_region
      %34 = dma.done [#allocation3], 256
    $region13: #{tpu_custom_call.1} parent=1 // pred_fallthru
      _
    // Predicated region
    $region14: #{tpu_custom_call.1} parent=1 // pred_check
      _
    $region15: #{tpu_custom_call.1} parent=1 // pred_check_branch
      %36 = sbr.rel (0) target = $region17
    $region16: #{tpu_custom_call.1} parent=1 // pred_region
      %37 = dma.done [#allocation6], 128
    $region17: #{tpu_custom_call.1} parent=1 // pred_fallthru
      _
    %v38 = vld [vmem:[#allocation2] sm:$0xff]
    %v39 = vld [vmem:[#allocation2 + $0x8] sm:$0xff]
    %v40 = vld [vmem:[#allocation5] sm:$0xff]
    %v41 = vadd.f32 %v38, %v40
    %v42 = vadd.f32 %v39, %v40
    %vm43 = vcmask 261120
    %44 = vst.msk [vmem:[#allocation7] sm:$0xff] %vm43, %v41
    %45 = vst.msk [vmem:[#allocation7 + $0x8] sm:$0xff] %vm43, %v42
    // Predicated region
    $region18: #{tpu_custom_call.1} parent=1 // pred_check
      _
    $region19: #{tpu_custom_call.1} parent=1 // pred_check_branch
      %47 = sbr.rel (0) target = $region21
    $region20: #{tpu_custom_call.1} parent=1 // pred_region
      %s49 = ssub.s32 256, 256
      %50 = vsyncadd [#allocation4], %s49
      %s51 = sshll.u32 [#allocation7], 4
      %s52 = int_to_ptr.vmem [resolvable:$true] %s51
      %57 = dma.vmem_to_hbm [thread:$0]  %s52, 256, %s2, [#allocation4], 128, 128, 8
    $region21: #{tpu_custom_call.1} parent=1 // pred_fallthru
      _
    // Predicated region
    $region22: #{tpu_custom_call.1} parent=1 // pred_check
      _
    $region23: #{tpu_custom_call.1} parent=1 // pred_check_branch
      %59 = sbr.rel (0) target = $region25
    $region24: #{tpu_custom_call.1} parent=1 // pred_region
      %60 = dma.done [#allocation4], 256
    $region25: #{tpu_custom_call.1} parent=1 // pred_fallthru
      _
    %61 = vsyncpa [#allocation3], 1
    %62 = vsyncpa [#allocation6], 1
    %63 = vsyncpa [#allocation4], 1

</llo_original>
